<compile_context>
chip_gen: v5e
topology: v5e:2x2
jax: 0.10.0
libtpu: 0.0.40
codegen_flags: <defaults>
</compile_context>

<pallas_src>
import functools

import jax
import jax.numpy as jnp
from jax.experimental import pallas as pl
from jax.experimental.pallas import tpu as pltpu

LANE = 128   # lane width / padded feature width for hidden + output
SEG = 16     # row alignment of packed weight segments (clean for f32 and bf16 sublane packing)


def _round_up(x, m):
    return (x + m - 1) // m * m


def _cdiv(a, b):
    return -(-a // b)


# ---------------------------------------------------------------------------
# Parameter packing (hoist out of the per-call path; call once, reuse).
# ---------------------------------------------------------------------------
def pack_qnetwork_params(params, param_dtype=jnp.bfloat16):
    """Pack W1,W2,W3 into one zero-padded (rows, 128) buffer (param_dtype) and
    b1,b2,b3 into a tiny (8, 128) f32 buffer.  Two constant inputs -> two one-time DMAs."""
    w1, b1, w2, b2, w3, b3 = (params["W1"], params["b1"], params["W2"],
                              params["b2"], params["W3"], params["b3"])
    state_size, fc1 = w1.shape
    fc2 = w2.shape[1]
    action_size = w3.shape[1]
    assert fc1 <= LANE and fc2 <= LANE and action_size <= LANE, \
        "this packing assumes hidden/output widths <= 128"

    s_p = _round_up(max(state_size, 1), SEG)
    total = s_p + 2 * LANE

    wbuf = jnp.zeros((total, LANE), param_dtype)
    wbuf = wbuf.at[0:state_size, 0:fc1].set(w1.astype(param_dtype))
    wbuf = wbuf.at[s_p:s_p + fc1, 0:fc2].set(w2.astype(param_dtype))
    wbuf = wbuf.at[s_p + LANE:s_p + LANE + fc2, 0:action_size].set(w3.astype(param_dtype))

    bbuf = jnp.zeros((8, LANE), jnp.float32)          # biases kept full-precision f32
    bbuf = bbuf.at[0, 0:fc1].set(b1.reshape(-1).astype(jnp.float32))
    bbuf = bbuf.at[1, 0:fc2].set(b2.reshape(-1).astype(jnp.float32))
    bbuf = bbuf.at[2, 0:action_size].set(b3.reshape(-1).astype(jnp.float32))
    return wbuf, bbuf


# ---------------------------------------------------------------------------
# Kernel: one batch tile, fused 3-layer MLP, f32 accumulation throughout.
# ---------------------------------------------------------------------------
def _qnetwork_kernel(x_ref, w_ref, b_ref, out_ref, *, s_p):
    x = x_ref[...]                                    # (TILE_B, s_p), operand dtype
    w1 = w_ref[0:s_p, :]                              # (s_p, 128)   static slices: zero cost
    w2 = w_ref[s_p:s_p + LANE, :]                     # (128, 128)
    w3 = w_ref[s_p + LANE:s_p + 2 * LANE, :]          # (128, 128)
    b1 = b_ref[0:1, :]                                # (1, 128) f32
    b2 = b_ref[1:2, :]
    b3 = b_ref[2:3, :]

    h1 = jnp.dot(x, w1, preferred_element_type=jnp.float32) + b1
    h1 = jnp.maximum(h1, 0.0).astype(w2.dtype)        # cast only at the MXU inputs
    h2 = jnp.dot(h1, w2, preferred_element_type=jnp.float32) + b2
    h2 = jnp.maximum(h2, 0.0).astype(w3.dtype)
    q = jnp.dot(h2, w3, preferred_element_type=jnp.float32) + b3
    out_ref[...] = q.astype(out_ref.dtype)            # lane-dense (TILE_B, 128) store


# ---------------------------------------------------------------------------
# Wrappers
# ---------------------------------------------------------------------------
def _choose_tile(batch, tile_b):
    """Batch tile: multiple of 8 sublanes; ensure >=2 grid steps when there's enough work
    so dimension_semantics=("parallel",) can shard across both v7x TensorCores."""
    b_al = _round_up(max(batch, 1), 8)
    tb = min(_round_up(tile_b, 8), b_al)
    if b_al <= tb and b_al > 8:                       # whole batch fits in one tile -> split in 2
        tb = _round_up(_cdiv(b_al, 2), 8)
    b_pad = _round_up(b_al, tb)
    return tb, b_pad


def qnetwork_forward_packed(x, wbuf, bbuf, *, action_size, tile_b=2048,
                            out_dtype=jnp.bfloat16):
    """x: (batch, state_size).  wbuf/bbuf from pack_qnetwork_params.  Returns (batch, action_size) f32."""
    batch, state_size = x.shape
    param_dtype = wbuf.dtype
    total = wbuf.shape[0]
    s_p = total - 2 * LANE
    assert state_size <= s_p, "x feature dim larger than packed W1 segment"

    tb, b_pad = _choose_tile(batch, tile_b)

    # Pad batch->b_pad, features->s_p; cast to the MXU operand dtype (fuses under jit).
    xp = jnp.zeros((b_pad, s_p), param_dtype).at[:batch, :state_size].set(x.astype(param_dtype))

    # Rough VMEM estimate; only raise the scoped limit when a big tile actually needs it.
    pbytes = jnp.dtype(param_dtype).itemsize
    obytes = jnp.dtype(out_dtype).itemsize
    est = (2 * tb * s_p * pbytes            # x, double-buffered
           + 2 * tb * LANE * obytes         # out, double-buffered
           + 2 * total * LANE * pbytes      # packed weights (constant; conservatively 2x)
           + 2 * 8 * LANE * 4               # biases
           + 6 * tb * LANE * 4)             # f32 intermediates h1/h2/q + operand casts (rough)
    vmem_limit = None
    if est > 12 * (1 << 20):
        vmem_limit = int(min(max(est * 1.5, 32 * (1 << 20)), 128 * (1 << 20)))

    kernel = functools.partial(_qnetwork_kernel, s_p=s_p)

    out = pl.pallas_call(
        kernel,
        out_shape=jax.ShapeDtypeStruct((b_pad, LANE), out_dtype),
        grid=(b_pad // tb,),
        in_specs=[
            pl.BlockSpec((tb, s_p), lambda i: (i, 0)),        # x: batch-tiled, pipelined
            pl.BlockSpec((total, LANE), lambda i: (0, 0)),    # packed weights: VMEM-resident
            pl.BlockSpec((8, LANE), lambda i: (0, 0)),        # f32 biases: VMEM-resident
        ],
        out_specs=pl.BlockSpec((tb, LANE), lambda i: (i, 0)),  # lane-dense output tile
        compiler_params=pltpu.CompilerParams(
            dimension_semantics=("parallel",),                 # megacore sharding on v7x
            vmem_limit_bytes=vmem_limit),
    )(xp, wbuf, bbuf)

    return out[:batch, :action_size].astype(jnp.float32)


def qnetwork_forward(x, params, *, tile_b=2048, param_dtype=jnp.bfloat16,
                     out_dtype=jnp.bfloat16):
    """Convenience one-shot wrapper (packs per call).  For repeated inference use
    make_qnetwork_fn, which packs once and jits."""
    action_size = params["W3"].shape[1]
    wbuf, bbuf = pack_qnetwork_params(params, param_dtype)
    return qnetwork_forward_packed(x, wbuf, bbuf, action_size=action_size,
                                   tile_b=tile_b, out_dtype=out_dtype)


def make_qnetwork_fn(params, *, tile_b=2048, param_dtype=jnp.bfloat16,
                     out_dtype=jnp.bfloat16):
    """Pack parameters once and return a jitted forward fn: x -> (batch, action_size) f32."""
    action_size = params["W3"].shape[1]
    wbuf, bbuf = pack_qnetwork_params(params, param_dtype)

    def fwd(x):
        return qnetwork_forward_packed(x, wbuf, bbuf, action_size=action_size,
                                       tile_b=tile_b, out_dtype=out_dtype)

    return jax.jit(fwd)


# ---------------------------------------------------------------------------
# Init + references
# ---------------------------------------------------------------------------
def init_qnetwork_params(key, state_size, action_size, fc1_units=64, fc2_units=64):
    """Deterministic init mimicking torch.nn.Linear default: U(-1/sqrt(fan_in), 1/sqrt(fan_in))."""
    def linear_init(k, fan_in, fan_out):
        kw, kb = jax.random.split(k)
        bound = 1.0 / jnp.sqrt(float(fan_in))
        W = jax.random.uniform(kw, (fan_in, fan_out), jnp.float32, -bound, bound)  # (in, out)
        b = jax.random.uniform(kb, (1, fan_out), jnp.float32, -bound, bound)
        return W, b

    k1, k2, k3 = jax.random.split(key, 3)
    W1, b1 = linear_init(k1, state_size, fc1_units)
    W2, b2 = linear_init(k2, fc1_units, fc2_units)
    W3, b3 = linear_init(k3, fc2_units, action_size)
    return {"W1": W1, "b1": b1, "W2": W2, "b2": b2, "W3": W3, "b3": b3}


def qnetwork_ref(x, p):
    """Pure-JAX f32 reference (mirrors the PyTorch module)."""
    h1 = jnp.maximum(x @ p["W1"] + p["b1"], 0.0)
    h2 = jnp.maximum(h1 @ p["W2"] + p["b2"], 0.0)
    return h2 @ p["W3"] + p["b3"]


def qnetwork_ref_cast(x, p, dtype):
    """Reference mirroring the kernel's reduced-precision operand path
    (dtype operands, f32 accumulation, f32 biases/ReLU)."""
    c = lambda a: a.astype(dtype)
    h1 = jnp.maximum(jnp.dot(c(x), c(p["W1"]), preferred_element_type=jnp.float32) + p["b1"], 0.0)
    h2 = jnp.maximum(jnp.dot(c(h1), c(p["W2"]), preferred_element_type=jnp.float32) + p["b2"], 0.0)
    return jnp.dot(c(h2), c(p["W3"]), preferred_element_type=jnp.float32) + p["b3"]


if __name__ == "__main__":
    key = jax.random.PRNGKey(0)
    kx, kp, kx2 = jax.random.split(key, 3)

    batch, state_size, action_size = 2, 8, 4
    fc1_units, fc2_units = 64, 64

    x = jax.random.normal(kx, (batch, state_size), jnp.float32)
    params = init_qnetwork_params(kp, state_size, action_size, fc1_units, fc2_units)

    # 1) Exact-parity f32 path (matches the PyTorch module numerics), small shapes.
    out_f32 = qnetwork_forward(x, params, param_dtype=jnp.float32, out_dtype=jnp.float32)
    jax.block_until_ready(out_f32)
    ref = qnetwork_ref(x, params)
    assert out_f32.shape == (batch, action_size)
    assert jnp.allclose(out_f32, ref, atol=1e-4, rtol=1e-4), "Pallas f32 mismatch vs reference"

    # 2) Default fast path: bf16 operands + bf16 lane-dense writeback, f32 accumulation and
    #    f32 biases; params packed once and the whole forward jitted.  Non-multiple batch
    #    exercises padding, the batch grid and the >=2-step megacore split.
    fwd = make_qnetwork_fn(params)
    xb = jax.random.normal(kx2, (300, state_size), jnp.float32)
    outb = fwd(xb)
    jax.block_until_ready(outb)
    assert outb.shape == (300, action_size)
    refb = qnetwork_ref_cast(xb, params, jnp.bfloat16)
    assert jnp.allclose(outb, refb, atol=5e-2, rtol=5e-2), "Pallas bf16 mismatch vs cast reference"
    assert jnp.allclose(outb, qnetwork_ref(xb, params), atol=1e-1, rtol=1e-1), \
        "Pallas bf16 far from f32 reference"

    print("KERNEL_OK")
</pallas_src>

<mosaic_0001>
module attributes {stable_mosaic.version = 11 : i64} {
  func.func @_qnetwork_kernel(%arg0: i32, %arg1: memref<8x16xf32, #tpu.memory_space<vmem>>, %arg2: memref<272x128xf32, #tpu.memory_space<vmem>>, %arg3: memref<8x128xf32, #tpu.memory_space<vmem>>, %arg4: memref<8x128xf32, #tpu.memory_space<vmem>>) attributes {dimension_semantics = [#tpu.dimension_semantics<parallel>], iteration_bounds = array<i64: 1>, scalar_prefetch = 0 : i64, scratch_operands = 0 : i64, tpu.core_type = #tpu.core_type<tc>, window_params = [{transform_indices = @transform_0, window_bounds = array<i64: 8, 16>}, {pipeline_mode = #tpu.pipeline_mode<synchronous>, transform_indices = @transform_1, window_bounds = array<i64: 272, 128>}, {pipeline_mode = #tpu.pipeline_mode<synchronous>, transform_indices = @transform_2, window_bounds = array<i64: 8, 128>}, {transform_indices = @transform_3, window_bounds = array<i64: 8, 128>}]} {
    %c0 = arith.constant 0 : index
    %c0_0 = arith.constant 0 : index
    %0 = vector.load %arg1[%c0, %c0_0] : memref<8x16xf32, #tpu.memory_space<vmem>>, vector<8x16xf32>
    %c0_1 = arith.constant 0 : index
    %c0_2 = arith.constant 0 : index
    %1 = vector.load %arg2[%c0_1, %c0_2] : memref<272x128xf32, #tpu.memory_space<vmem>>, vector<16x128xf32>
    %c16 = arith.constant 16 : index
    %c0_3 = arith.constant 0 : index
    %2 = vector.load %arg2[%c16, %c0_3] : memref<272x128xf32, #tpu.memory_space<vmem>>, vector<128x128xf32>
    %c144 = arith.constant 144 : index
    %c0_4 = arith.constant 0 : index
    %3 = vector.load %arg2[%c144, %c0_4] : memref<272x128xf32, #tpu.memory_space<vmem>>, vector<128x128xf32>
    %c0_5 = arith.constant 0 : index
    %c0_6 = arith.constant 0 : index
    %4 = vector.load %arg3[%c0_5, %c0_6] : memref<8x128xf32, #tpu.memory_space<vmem>>, vector<1x128xf32>
    %c1 = arith.constant 1 : index
    %c0_7 = arith.constant 0 : index
    %5 = vector.load %arg3[%c1, %c0_7] : memref<8x128xf32, #tpu.memory_space<vmem>>, vector<1x128xf32>
    %c2 = arith.constant 2 : index
    %c0_8 = arith.constant 0 : index
    %6 = vector.load %arg3[%c2, %c0_8] : memref<8x128xf32, #tpu.memory_space<vmem>>, vector<1x128xf32>
    %cst = arith.constant dense<0.000000e+00> : vector<8x128xf32>
    %7 = tpu.matmul %0, %1, %cst {dimension_numbers = #tpu.dot_dimension_numbers<[1], [0], [0], [1], [0, 0, 1, 1], [], []>} : vector<8x16xf32>, vector<16x128xf32>, vector<8x128xf32> -> vector<8x128xf32>
    %8 = vector.broadcast %4 : vector<1x128xf32> to vector<8x128xf32>
    %9 = arith.addf %7, %8 : vector<8x128xf32>
    %cst_9 = arith.constant 0.000000e+00 : f32
    %10 = vector.broadcast %cst_9 : f32 to vector<8x128xf32>
    %11 = arith.maximumf %9, %10 : vector<8x128xf32>
    %cst_10 = arith.constant dense<0.000000e+00> : vector<8x128xf32>
    %12 = tpu.matmul %11, %2, %cst_10 {dimension_numbers = #tpu.dot_dimension_numbers<[1], [0], [0], [1], [0, 0, 1, 1], [], []>} : vector<8x128xf32>, vector<128x128xf32>, vector<8x128xf32> -> vector<8x128xf32>
    %13 = vector.broadcast %5 : vector<1x128xf32> to vector<8x128xf32>
    %14 = arith.addf %12, %13 : vector<8x128xf32>
    %cst_11 = arith.constant 0.000000e+00 : f32
    %15 = vector.broadcast %cst_11 : f32 to vector<8x128xf32>
    %16 = arith.maximumf %14, %15 : vector<8x128xf32>
    %cst_12 = arith.constant dense<0.000000e+00> : vector<8x128xf32>
    %17 = tpu.matmul %16, %3, %cst_12 {dimension_numbers = #tpu.dot_dimension_numbers<[1], [0], [0], [1], [0, 0, 1, 1], [], []>} : vector<8x128xf32>, vector<128x128xf32>, vector<8x128xf32> -> vector<8x128xf32>
    %18 = vector.broadcast %6 : vector<1x128xf32> to vector<8x128xf32>
    %19 = arith.addf %17, %18 : vector<8x128xf32>
    %c0_13 = arith.constant 0 : index
    %c0_14 = arith.constant 0 : index
    %20 = vector.load %arg4[%c0_13, %c0_14] : memref<8x128xf32, #tpu.memory_space<vmem>>, vector<8x128xf32>
    tpu.vector_store %arg4[%c0_13, %c0_14], %19 {strides = array<i32>} : memref<8x128xf32, #tpu.memory_space<vmem>>, vector<8x128xf32>,
    return
  }
  func.func @transform_0(%arg0: i32) -> (i32, i32) {
    %c0_i32 = arith.constant 0 : i32
    %c0_i32_0 = arith.constant 0 : i32
    return %arg0, %c0_i32 : i32, i32
  }
  func.func @transform_1(%arg0: i32) -> (i32, i32) {
    %c0_i32 = arith.constant 0 : i32
    %c0_i32_0 = arith.constant 0 : i32
    %c0_i32_1 = arith.constant 0 : i32
    return %c0_i32, %c0_i32_0 : i32, i32
  }
  func.func @transform_2(%arg0: i32) -> (i32, i32) {
    %c0_i32 = arith.constant 0 : i32
    %c0_i32_0 = arith.constant 0 : i32
    %c0_i32_1 = arith.constant 0 : i32
    return %c0_i32, %c0_i32_0 : i32, i32
  }
  func.func @transform_3(%arg0: i32) -> (i32, i32) {
    %c0_i32 = arith.constant 0 : i32
    %c0_i32_0 = arith.constant 0 : i32
    return %arg0, %c0_i32 : i32, i32
  }
}

</mosaic_0001>

<llo_original>
// kernel: tpu_custom_call.1
$region0: #{tpu_custom_call.1}
  #allocation0 [shape = 'u32[]', space=smem, size = 0x4, offset = 0x4, fixed_abs, tag = 'smem constant byte address 0x4 - core index']
  #allocation1 [shape = 'u32[72,128]{1,0:T(1,128)}', space=vmem, size = 0x9000, scoped, tag = 'internal scratch']
  %s0 = inlined_call_operand.hbm [shape: f32[8,16], index: 0, kind: input, shape index: {}]
  %s1 = inlined_call_operand.hbm [shape: f32[272,128], index: 1, kind: input, shape index: {}]
  %s2 = inlined_call_operand.hbm [shape: f32[8,128], index: 2, kind: input, shape index: {}]
  %s3 = inlined_call_operand.hbm [shape: f32[8,128], index: 3, kind: output, shape index: {}]
  %s4 = sld [smem:[#allocation0]]
  $region34: #{tpu_custom_call.1} parent=0
    _
  %s6 = ssub.s32 1, %s4
  %s7 = scalar_select 0, %s6, %s4
  $region1: #{tpu_custom_call.1} parent=0
    #allocation2 [shape = 'u8[4096]{0}', space=vmem, size = 0x1000, scoped, tag = 'input window, operand 0, single buffered']
    #allocation3 [shape = 's32[1]{0}', space=sflag, size = 0x4, scoped, tag = 'scoped memory for tpu_custom_call.1']
    #allocation4 [shape = 's32[1]{0}', space=sflag, size = 0x4, scoped, tag = 'scoped memory for tpu_custom_call.1']
    #allocation5 [shape = 'u8[139264]{0}', space=vmem, size = 0x22000, scoped, tag = 'input window, operand 1, single buffered']
    #allocation6 [shape = 's32[1]{0}', space=sflag, size = 0x4, scoped, tag = 'scoped memory for tpu_custom_call.1']
    #allocation7 [shape = 'u8[4096]{0}', space=vmem, size = 0x1000, scoped, tag = 'input window, operand 2, single buffered']
    #allocation8 [shape = 'u8[4096]{0}', space=vmem, size = 0x1000, scoped, tag = 'output window, operand 0, single buffered']
    %8 = vsyncpa [#allocation3], 0
    %9 = vsyncpa [#allocation6], 0
    %10 = vsyncpa [#allocation4], 0
    // Predicated region
    $region2: #{tpu_custom_call.1} parent=1 // pred_check
      _
    $region3: #{tpu_custom_call.1} parent=1 // pred_check_branch
      %12 = sbr.rel (0) target = $region5
    $region4: #{tpu_custom_call.1} parent=1 // pred_region
      %14 = vsyncadd [#allocation3], 0
      %s16 = sshll.u32 %s0, 4
      %s17 = int_to_ptr.hbm [resolvable:$true] %s16
      %s18 = sshll.u32 [#allocation2], 4
      %s19 = int_to_ptr.vmem [resolvable:$true] %s18
      %21 = dma.hbm_to_vmem [thread:$0]  %s17, 128, %s19, [#allocation3]
    $region5: #{tpu_custom_call.1} parent=1 // pred_fallthru
      _
    // Predicated region
    $region6: #{tpu_custom_call.1} parent=1 // pred_check
      _
    $region7: #{tpu_custom_call.1} parent=1 // pred_check_branch
      %23 = sbr.rel (0) target = $region9
    $region8: #{tpu_custom_call.1} parent=1 // pred_region
      %25 = vsyncadd [#allocation6], 0
      %s26 = sshll.u32 %s1, 4
      %s27 = int_to_ptr.hbm [resolvable:$true] %s26
      %s28 = sshll.u32 [#allocation5], 4
      %s29 = int_to_ptr.vmem [resolvable:$true] %s28
      %34 = dma.hbm_to_vmem [thread:$0]  %s27, 4352, %s29, [#allocation6], 128, 128, 8
    $region9: #{tpu_custom_call.1} parent=1 // pred_fallthru
      _
    // Predicated region
    $region10: #{tpu_custom_call.1} parent=1 // pred_check
      _
    $region11: #{tpu_custom_call.1} parent=1 // pred_check_branch
      %36 = sbr.rel (0) target = $region13
    $region12: #{tpu_custom_call.1} parent=1 // pred_region
      %38 = vsyncadd [#allocation6], 0
      %s40 = sshll.u32 %s2, 4
      %s41 = int_to_ptr.hbm [resolvable:$true] %s40
      %s42 = sshll.u32 [#allocation7], 4
      %s43 = int_to_ptr.vmem [resolvable:$true] %s42
      %45 = dma.hbm_to_vmem [thread:$0]  %s41, 128, %s43, [#allocation6]
    $region13: #{tpu_custom_call.1} parent=1 // pred_fallthru
      _
    // Predicated region
    $region14: #{tpu_custom_call.1} parent=1 // pred_check
      _
    $region15: #{tpu_custom_call.1} parent=1 // pred_check_branch
      %47 = sbr.rel (0) target = $region17
    $region16: #{tpu_custom_call.1} parent=1 // pred_region
      %49 = dma.done [#allocation3], 128
    $region17: #{tpu_custom_call.1} parent=1 // pred_fallthru
      _
    // Predicated region
    $region18: #{tpu_custom_call.1} parent=1 // pred_check
      _
    $region19: #{tpu_custom_call.1} parent=1 // pred_check_branch
      %51 = sbr.rel (0) target = $region21
    $region20: #{tpu_custom_call.1} parent=1 // pred_region
      %53 = dma.done [#allocation6], 4352
    $region21: #{tpu_custom_call.1} parent=1 // pred_fallthru
      _
    // Predicated region
    $region22: #{tpu_custom_call.1} parent=1 // pred_check
      _
    $region23: #{tpu_custom_call.1} parent=1 // pred_check_branch
      %55 = sbr.rel (0) target = $region25
    $region24: #{tpu_custom_call.1} parent=1 // pred_region
      %57 = dma.done [#allocation6], 128
    $region25: #{tpu_custom_call.1} parent=1 // pred_fallthru
      _
    %v58 = vld [vmem:[#allocation2] sm:$0xff]
    %v59 = vld [vmem:[#allocation5] sm:$0xff]
    %v60 = vld [vmem:[#allocation5 + $0x8] sm:$0xff]
    %v61 = vld [vmem:[#allocation5 + $0x10] sm:$0xff]
    %v62 = vld [vmem:[#allocation5 + $0x18] sm:$0xff]
    %v63 = vld [vmem:[#allocation5 + $0x20] sm:$0xff]
    %v64 = vld [vmem:[#allocation5 + $0x28] sm:$0xff]
    %v65 = vld [vmem:[#allocation5 + $0x30] sm:$0xff]
    %v66 = vld [vmem:[#allocation5 + $0x38] sm:$0xff]
    %v67 = vld [vmem:[#allocation5 + $0x40] sm:$0xff]
    %v68 = vld [vmem:[#allocation5 + $0x48] sm:$0xff]
    %v69 = vld [vmem:[#allocation5 + $0x50] sm:$0xff]
    %v70 = vld [vmem:[#allocation5 + $0x58] sm:$0xff]
    %v71 = vld [vmem:[#allocation5 + $0x60] sm:$0xff]
    %v72 = vld [vmem:[#allocation5 + $0x68] sm:$0xff]
    %v73 = vld [vmem:[#allocation5 + $0x70] sm:$0xff]
    %v74 = vld [vmem:[#allocation5 + $0x78] sm:$0xff]
    %v75 = vld [vmem:[#allocation5 + $0x80] sm:$0xff]
    %v76 = vld [vmem:[#allocation5 + $0x88] sm:$0xff]
    %v77 = vld [vmem:[#allocation5 + $0x90] sm:$0xff]
    %v78 = vld [vmem:[#allocation5 + $0x98] sm:$0xff]
    %v79 = vld [vmem:[#allocation5 + $0xa0] sm:$0xff]
    %v80 = vld [vmem:[#allocation5 + $0xa8] sm:$0xff]
    %v81 = vld [vmem:[#allocation5 + $0xb0] sm:$0xff]
    %v82 = vld [vmem:[#allocation5 + $0xb8] sm:$0xff]
    %v83 = vld [vmem:[#allocation5 + $0xc0] sm:$0xff]
    %v84 = vld [vmem:[#allocation5 + $0xc8] sm:$0xff]
    %v85 = vld [vmem:[#allocation5 + $0xd0] sm:$0xff]
    %v86 = vld [vmem:[#allocation5 + $0xd8] sm:$0xff]
    %v87 = vld [vmem:[#allocation5 + $0xe0] sm:$0xff]
    %v88 = vld [vmem:[#allocation5 + $0xe8] sm:$0xff]
    %v89 = vld [vmem:[#allocation5 + $0xf0] sm:$0xff]
    %v90 = vld [vmem:[#allocation5 + $0xf8] sm:$0xff]
    %v91 = vld [vmem:[#allocation5 + $0x100] sm:$0xff]
    %v92 = vld [vmem:[#allocation5 + $0x108] sm:$0xff]
    %v93 = vld [vmem:[#allocation7] sm:$0x1]
    %v94 = vld [vmem:[#allocation7 + $0x1] sm:$0x1]
    %v95 = vld [vmem:[#allocation7 + $0x2] sm:$0x1]
    %v96 = vperm.slane %v93, 0
    %vm97 = vcmask 130048
    %v99 = vsel %vm97, %v58, 0
    %101 = vmatpush.msra.mxu0 0.0
    %102 = vmatpush.msra.mxu0 0.0
    %103 = vmatpush.msra.mxu0 0.0
    %104 = vmatpush.msra.mxu0 0.0
    %105 = vmatpush.msra.mxu0 0.0
    %106 = vmatpush.msra.mxu0 0.0
    %107 = vmatpush.msra.mxu0 0.0
    %108 = vmatpush.msra.mxu0 0.0
    %109 = vmatpush.msra.mxu0 0.0
    %110 = vmatpush.msra.mxu0 0.0
    %111 = vmatpush.msra.mxu0 0.0
    %112 = vmatpush.msra.mxu0 0.0
    %113 = vmatpush.msra.mxu0 0.0
    %114 = vmatpush.msra.mxu0 0.0
    %115 = vmatpush.msra.mxu0 %v60
    %116 = vmatpush.msra.mxu0 %v59
    %117 = vmatmul.f32.gmra.mxu0 %v99
    %v118 = vpop.f32.mrf.mxu0
    %v119 = vadd.f32 %v96, %v118
    %120 = vdwg.mxu0
    %v121 = vmax.f32 %v119, 0.0
    %v122 = vperm.slane %v94, 0
    %123 = vmatpush.msra.mxu0 %v76
    %124 = vmatpush.msra.mxu0 %v75
    %125 = vmatpush.msra.mxu0 %v74
    %126 = vmatpush.msra.mxu0 %v73
    %127 = vmatpush.msra.mxu0 %v72
    %128 = vmatpush.msra.mxu0 %v71
    %129 = vmatpush.msra.mxu0 %v70
    %130 = vmatpush.msra.mxu0 %v69
    %131 = vmatpush.msra.mxu0 %v68
    %132 = vmatpush.msra.mxu0 %v67
    %133 = vmatpush.msra.mxu0 %v66
    %134 = vmatpush.msra.mxu0 %v65
    %135 = vmatpush.msra.mxu0 %v64
    %136 = vmatpush.msra.mxu0 %v63
    %137 = vmatpush.msra.mxu0 %v62
    %138 = vmatpush.msra.mxu0 %v61
    %139 = vmatmul.f32.gmra.mxu0 %v121
    %v140 = vpop.f32.mrf.mxu0
    %v141 = vadd.f32 %v122, %v140
    %142 = vdwg.mxu0
    %v143 = vmax.f32 %v141, 0.0
    %v144 = vperm.slane %v95, 0
    %145 = vmatpush.msra.mxu0 %v92
    %146 = vmatpush.msra.mxu0 %v91
    %147 = vmatpush.msra.mxu0 %v90
    %148 = vmatpush.msra.mxu0 %v89
    %149 = vmatpush.msra.mxu0 %v88
    %150 = vmatpush.msra.mxu0 %v87
    %151 = vmatpush.msra.mxu0 %v86
    %152 = vmatpush.msra.mxu0 %v85
    %153 = vmatpush.msra.mxu0 %v84
    %154 = vmatpush.msra.mxu0 %v83
    %155 = vmatpush.msra.mxu0 %v82
    %156 = vmatpush.msra.mxu0 %v81
    %157 = vmatpush.msra.mxu0 %v80
    %158 = vmatpush.msra.mxu0 %v79
    %159 = vmatpush.msra.mxu0 %v78
    %160 = vmatpush.msra.mxu0 %v77
    %161 = vmatmul.f32.gmra.mxu0 %v143
    %v162 = vpop.f32.mrf.mxu0
    %v163 = vadd.f32 %v144, %v162
    %164 = vdwg.mxu0
    %165 = vst [vmem:[#allocation8] sm:$0xff] %v163
    // Predicated region
    $region26: #{tpu_custom_call.1} parent=1 // pred_check
      _
    $region27: #{tpu_custom_call.1} parent=1 // pred_check_branch
      %167 = sbr.rel (0) target = $region29
    $region28: #{tpu_custom_call.1} parent=1 // pred_region
      %169 = vsyncadd [#allocation4], 0
      %s171 = sshll.u32 [#allocation8], 4
      %s172 = int_to_ptr.vmem [resolvable:$true] %s171
      %s173 = sshll.u32 %s3, 4
      %s174 = int_to_ptr.hbm [resolvable:$true] %s173
      %176 = dma.vmem_to_hbm [thread:$0]  %s172, 128, %s174, [#allocation4]
    $region29: #{tpu_custom_call.1} parent=1 // pred_fallthru
      _
    // Predicated region
    $region30: #{tpu_custom_call.1} parent=1 // pred_check
      _
    $region31: #{tpu_custom_call.1} parent=1 // pred_check_branch
      %178 = sbr.rel (0) target = $region33
    $region32: #{tpu_custom_call.1} parent=1 // pred_region
      %180 = dma.done [#allocation4], 128
    $region33: #{tpu_custom_call.1} parent=1 // pred_fallthru
      _
    %181 = vsyncpa [#allocation3], 1
    %182 = vsyncpa [#allocation6], 1
    %183 = vsyncpa [#allocation4], 1

</llo_original>
